<compile_context>
chip_gen: v7x
topology: tpu7x:2x2x1
jax: 0.10.0
libtpu: 0.0.40
codegen_flags: <defaults>
</compile_context>

<pallas_src>
import functools

import jax
import jax.numpy as jnp
import numpy as np
from jax import lax
from jax.experimental import pallas as pl
from jax.experimental.pallas import tpu as pltpu


def _round_up(x, m):
    return (x + m - 1) // m * m


def _rvq_kernel(x_ref, e_ref, e2_ref, qout_ref, qlayer_ref, cnt_ref, res_ref, *,
                n_valid, k_valid, n_padded, num_q, codebook_resident, dist_bf16):
    """One (N-tile, quantizer-layer) grid step of the fused ResidualVQ forward.

    Grid = (n_tiles, num_q); the layer axis is innermost ("arbitrary").

    x_ref      : (TN, D)            input tile (block resident across the layer axis)
    e_ref      : (Q, C, D) | (C, D) codebook stack (resident) or this layer's codebook
    e2_ref     : (Q, 1, C)          precomputed ||e||^2 per code (resident)
    qout_ref   : (TN, D)            quantized_out, written once at the last layer
    qlayer_ref : (TN, D)            this layer's quantized output for this tile
    cnt_ref    : (Q, C)             per-tile code counts; lane `k_valid` carries the SSE
    res_ref    : (TN, D) VMEM       residual carried across the layer axis
    """
    i = pl.program_id(0)          # N-tile index
    q = pl.program_id(1)          # quantizer-layer index

    @pl.when(q == 0)
    def _():
        res_ref[...] = x_ref[...]

    r = res_ref[...]                                       # (TN, D) f32
    e = e_ref[q] if codebook_resident else e_ref[...]      # (C, D)  f32
    e2 = e2_ref[q]                                         # (1, C)  f32
    tn = r.shape[0]
    c = e.shape[0]

    # Distances: argmax over the code axis is invariant to the per-row ||r||^2
    # constant, so dist' = 2*r.e - ||e||^2 selects the same code as the reference.
    if dist_bf16:
        re = lax.dot_general(r.astype(jnp.bfloat16), e.astype(jnp.bfloat16),
                             (((1,), (1,)), ((), ())),
                             preferred_element_type=jnp.float32)     # (TN, C)
    else:
        re = lax.dot_general(r, e, (((1,), (1,)), ((), ())),
                             preferred_element_type=jnp.float32)     # (TN, C)
    dist = 2.0 * re - e2

    col = lax.broadcasted_iota(jnp.int32, (tn, c), 1)
    dist = jnp.where(col < k_valid, dist, -jnp.inf)        # mask zero-padded codes

    # argmax with first-index tie break (matches torch .max(dim=-1).indices)
    max_d = jnp.max(dist, axis=-1, keepdims=True)                    # (TN, 1)
    idx = jnp.min(jnp.where(dist == max_d, col, c), axis=-1, keepdims=True)
    onehot = (col == idx).astype(jnp.float32)                        # (TN, C)

    if n_valid < n_padded:                                 # mask zero-padded batch rows
        row = lax.broadcasted_iota(jnp.int32, (tn, 1), 0) + i * tn
        onehot = jnp.where(row < n_valid, onehot, 0.0)

    # Dequantize: one-hot gather of the code vectors via the MXU.
    quant = jnp.dot(onehot, e, preferred_element_type=jnp.float32)   # (TN, D)

    qlayer_ref[...] = quant.astype(qlayer_ref.dtype)
    res_ref[...] = r - quant

    # Per-code counts on the MXU (frees the saturated VPU/XLU slots); the SSE is
    # packed into the padded lane `k_valid` of the same lane-dense row so there is
    # no separate 1-wide masked-store output.
    cnt_row = lax.dot_general(jnp.ones((1, tn), jnp.float32), onehot,
                              (((1,), (0,)), ((), ())),
                              preferred_element_type=jnp.float32)    # (1, C)
    diff = quant - r
    sse = jnp.sum(diff * diff)
    lane = lax.broadcasted_iota(jnp.int32, (1, c), 1)
    cnt_ref[pl.ds(q, 1), :] = jnp.where(lane == k_valid, sse, cnt_row)

    # quantized_out = x - final residual (single write instead of per-layer RMW).
    @pl.when(q == num_q - 1)
    def _():
        qout_ref[...] = (x_ref[...] - res_ref[...]).astype(qout_ref.dtype)


def _choose_tiling(N, D, C, num_q):
    """Pick (tile_n, vmem_limit_bytes, codebook_resident) from the chip's VMEM size."""
    try:
        vmem_cap = int(pltpu.get_tpu_info().vmem_capacity_bytes)
    except Exception:
        vmem_cap = 64 * 1024 * 1024            # conservative fallback (v7x-sized)
    vmem_limit = min(int(vmem_cap * 0.70), 96 * 1024 * 1024)

    cb_bytes = num_q * C * D * 4
    resident = cb_bytes <= min(16 * 1024 * 1024, vmem_limit // 3)
    fixed = (cb_bytes if resident else 2 * C * D * 4) + 2 * num_q * C * 4

    def est(tn):
        blocks = 3 * 2 * tn * D * 4                      # x / qout / qlayer, double-buffered
        blocks += 2 * _round_up(num_q, 8) * C * 4        # counts block
        scratch = tn * D * 4                             # residual carry
        temps = 4 * tn * C * 4 + 3 * tn * D * 4          # re/dist/col/onehot + quant/diff
        return fixed + blocks + scratch + temps

    n_up = _round_up(max(N, 8), 8)
    budget = int(vmem_limit * 0.85)
    tile_n = 8
    for cand in (2048, 1536, 1024, 768, 512, 384, 256, 192, 128, 96, 64, 32, 16, 8):
        if cand > n_up:
            continue
        if est(cand) <= budget:
            tile_n = cand
            break
    return min(tile_n, n_up), vmem_limit, resident


def residual_vq_forward(x, embeds, commitment=1.0, tile_n=None, dist_bf16=False,
                        layer_out_dtype=jnp.float32):
    """ResidualVQ.forward (eval path).

    x      : (B, T, D) f32
    embeds : list of (K, D) codebooks (one per quantizer layer)

    Returns (quantized_out, all_embed_nums, all_losses, all_perplexities,
             all_layers_output) matching the PyTorch module.
    """
    B, T, D = x.shape
    N = B * T
    num_q = len(embeds)
    K = embeds[0].shape[0]

    # Lane-dense codebook width; the extra padded lane at index K carries the
    # per-(tile,layer) SSE inside the counts output.
    # TODO(synk): if D is not a multiple of 128 (demo uses D=32) the x / quant
    # blocks use masked partial vector ops; real RVQ dims >= 128 avoid this.
    C = _round_up(K + 1, 128)

    auto_tn, vmem_limit, resident = _choose_tiling(N, D, C, num_q)
    if tile_n is None:
        tile_n = auto_tn
    tile_n = max(8, _round_up(min(tile_n, _round_up(N, 8)), 8))

    N_pad = _round_up(N, tile_n)
    n_tiles = N_pad // tile_n
    if n_tiles > 1 and n_tiles % 2 == 1:     # keep the parallel axis even for v7x megacore
        n_tiles += 1
        N_pad = n_tiles * tile_n

    x_flat = x.reshape(N, D).astype(jnp.float32)
    if N_pad != N:
        x_flat = jnp.pad(x_flat, ((0, N_pad - N), (0, 0)))

    e_stack = jnp.stack([e.astype(jnp.float32) for e in embeds])       # (Q, K, D)
    e_stack = jnp.pad(e_stack, ((0, 0), (0, C - K), (0, 0)))           # (Q, C, D)
    e2_stack = jnp.sum(e_stack * e_stack, axis=-1)[:, None, :]         # (Q, 1, C)

    kernel = functools.partial(
        _rvq_kernel, n_valid=N, k_valid=K, n_padded=N_pad, num_q=num_q,
        codebook_resident=resident, dist_bf16=dist_bf16)

    if resident:
        # Constant block index -> the whole codebook stack is DMA'd once and stays
        # resident in VMEM; the kernel indexes e_ref[q].
        e_spec = pl.BlockSpec((num_q, C, D), lambda i, q: (0, 0, 0))
    else:
        # TODO(synk): for very large codebooks add an in-kernel chunked-K online
        # argmax so the (TN, C) temporaries stay bounded on v7x's 64 MiB VMEM.
        e_spec = pl.BlockSpec((None, C, D), lambda i, q: (q, 0, 0))

    qout, qlayers, cnt = pl.pallas_call(
        kernel,
        grid=(n_tiles, num_q),
        in_specs=[
            pl.BlockSpec((tile_n, D), lambda i, q: (i, 0)),            # x tile
            e_spec,                                                    # codebooks
            pl.BlockSpec((num_q, 1, C), lambda i, q: (0, 0, 0)),       # ||e||^2 (resident)
        ],
        out_specs=(
            pl.BlockSpec((tile_n, D), lambda i, q: (i, 0)),            # quantized_out
            pl.BlockSpec((None, tile_n, D), lambda i, q: (q, i, 0)),   # per-layer quant
            pl.BlockSpec((None, num_q, C), lambda i, q: (i, 0, 0)),    # counts (+ SSE lane)
        ),
        out_shape=(
            jax.ShapeDtypeStruct((N_pad, D), jnp.float32),
            jax.ShapeDtypeStruct((num_q, N_pad, D), layer_out_dtype),
            jax.ShapeDtypeStruct((n_tiles, num_q, C), jnp.float32),
        ),
        scratch_shapes=[pltpu.VMEM((tile_n, D), jnp.float32)],         # residual carry
        compiler_params=pltpu.CompilerParams(
            dimension_semantics=("parallel", "arbitrary"),
            vmem_limit_bytes=vmem_limit,
        ),
    )(x_flat, e_stack, e2_stack)

    # Tiny epilogue in plain JAX (per-layer reductions over tiles).
    quantized_out = qout[:N].reshape(B, T, D)
    all_layer_outs = [qlayers[q, :N].reshape(B, T, D).astype(jnp.float32)
                      for q in range(num_q)]

    cnt_sum = jnp.sum(cnt, axis=0)                                     # (Q, C)
    embed_num = cnt_sum[:, :K]                                         # (Q, K)
    loss_sum = cnt_sum[:, K]                                           # (Q,)  packed SSE

    commit_loss = (loss_sum / (N * D)) * commitment                    # F.mse_loss mean
    avg_probs = embed_num / N
    perplexity = jnp.exp(-jnp.sum(avg_probs * jnp.log(avg_probs + 1e-10), axis=-1))

    return quantized_out, embed_num, commit_loss, perplexity, all_layer_outs


def _reference_forward(x, embeds):
    """Pure-JAX reference (mirrors the PyTorch module)."""
    B, T, D = x.shape
    n = B * T
    hp = jax.lax.Precision.HIGHEST
    residual = x.reshape(n, D)
    qout = jnp.zeros_like(residual)
    nums, losses, perps, outs = [], [], [], []
    for e in embeds:
        dist = -(jnp.sum(residual ** 2, axis=1, keepdims=True)
                 - 2.0 * jnp.dot(residual, e.T, precision=hp)
                 + jnp.sum(e ** 2, axis=1)[None, :])
        idx = jnp.argmax(dist, axis=-1)
        onehot = jax.nn.one_hot(idx, e.shape[0], dtype=jnp.float32)
        quant = jnp.dot(onehot, e, precision=hp)
        losses.append(jnp.mean((quant - residual) ** 2))
        num = jnp.sum(onehot, axis=0)
        nums.append(num)
        ap = num / n
        perps.append(jnp.exp(-jnp.sum(ap * jnp.log(ap + 1e-10))))
        outs.append(quant.reshape(B, T, D))
        qout = qout + quant
        residual = residual - quant
    return (qout.reshape(B, T, D), jnp.stack(nums), jnp.stack(losses),
            jnp.stack(perps), outs)


if __name__ == "__main__":
    # Small shapes consistent with the module: (B, T, D) = (2, 8, 32),
    # codebook_size = 64, 3 quantizer layers.
    B, T, D = 2, 8, 32
    K = 64
    NUM_Q = 3

    key = jax.random.PRNGKey(0)
    k_x, k_e = jax.random.split(key)
    x = jax.random.normal(k_x, (B, T, D), dtype=jnp.float32)

    # Deterministic synthetic codebooks (kaiming-uniform style bound).
    # TODO(synk): kmeans codebook init / EMA update / dead-code expiration are
    # training-time, data-dependent buffer mutations and are not part of the
    # eval forward.
    bound = (6.0 / D) ** 0.5
    embeds = [jax.random.uniform(k, (K, D), jnp.float32, -bound, bound)
              for k in jax.random.split(k_e, NUM_Q)]

    out = residual_vq_forward(x, embeds)
    out = jax.tree_util.tree_map(jax.block_until_ready, out)
    quantized_out, all_embed_nums, all_losses, all_perps, all_layer_outs = out

    assert quantized_out.shape == (B, T, D)
    assert all_embed_nums.shape == (NUM_Q, K)
    assert all_losses.shape == (NUM_Q,)
    assert all_perps.shape == (NUM_Q,)
    assert len(all_layer_outs) == NUM_Q and all_layer_outs[0].shape == (B, T, D)

    # Correctness check against a pure-JAX reference.
    ref = _reference_forward(x, embeds)
    ref = jax.tree_util.tree_map(jax.block_until_ready, ref)
    r_qout, r_nums, r_losses, r_perps, r_outs = ref
    np.testing.assert_allclose(quantized_out, r_qout, rtol=1e-4, atol=1e-4)
    np.testing.assert_allclose(all_embed_nums, r_nums, rtol=0, atol=1e-3)
    np.testing.assert_allclose(all_losses, r_losses, rtol=1e-4, atol=1e-5)
    np.testing.assert_allclose(all_perps, r_perps, rtol=1e-4, atol=1e-4)
    for a, b in zip(all_layer_outs, r_outs):
        np.testing.assert_allclose(a, b, rtol=1e-4, atol=1e-4)

    print("KERNEL_OK")
</pallas_src>

<mosaic_0001>
module attributes {stable_mosaic.version = 11 : i64} {
  func.func @_rvq_kernel(%arg0: i32, %arg1: i32, %arg2: memref<16x32xf32, #tpu.memory_space<vmem>>, %arg3: memref<3x128x32xf32, #tpu.memory_space<vmem>>, %arg4: memref<3x1x128xf32, #tpu.memory_space<vmem>>, %arg5: memref<16x32xf32, #tpu.memory_space<vmem>>, %arg6: memref<1x16x32xf32, #tpu.memory_space<vmem>>, %arg7: memref<1x3x128xf32, #tpu.memory_space<vmem>>, %arg8: memref<16x32xf32, #tpu.memory_space<vmem>>) attributes {dimension_semantics = [#tpu.dimension_semantics<parallel>, #tpu.dimension_semantics<arbitrary>], iteration_bounds = array<i64: 1, 3>, scalar_prefetch = 0 : i64, scratch_operands = 1 : i64, tpu.core_type = #tpu.core_type<tc>, window_params = [{transform_indices = @transform_0, window_bounds = array<i64: 16, 32>}, {pipeline_mode = #tpu.pipeline_mode<synchronous>, transform_indices = @transform_1, window_bounds = array<i64: 3, 128, 32>}, {pipeline_mode = #tpu.pipeline_mode<synchronous>, transform_indices = @transform_2, window_bounds = array<i64: 3, 1, 128>}, {transform_indices = @transform_3, window_bounds = array<i64: 16, 32>}, {transform_indices = @transform_4, window_bounds = array<i64: 1, 16, 32>}, {transform_indices = @transform_5, window_bounds = array<i64: 1, 3, 128>}]} {
    %c0_i32 = arith.constant 0 : i32
    %0 = arith.cmpi eq, %arg1, %c0_i32 : i32
    %1 = arith.extui %0 : i1 to i32
    %c0_i32_0 = arith.constant 0 : i32
    %2 = arith.cmpi ne, %1, %c0_i32_0 : i32
    scf.if %2 {
      %c0_23 = arith.constant 0 : index
      %c0_24 = arith.constant 0 : index
      %58 = vector.load %arg2[%c0_23, %c0_24] : memref<16x32xf32, #tpu.memory_space<vmem>>, vector<16x32xf32>
      %c0_25 = arith.constant 0 : index
      %c0_26 = arith.constant 0 : index
      %59 = vector.load %arg8[%c0_25, %c0_26] : memref<16x32xf32, #tpu.memory_space<vmem>>, vector<16x32xf32>
      tpu.vector_store %arg8[%c0_25, %c0_26], %58 {strides = array<i32>} : memref<16x32xf32, #tpu.memory_space<vmem>>, vector<16x32xf32>,
    } else {
    }
    %c0 = arith.constant 0 : index
    %c0_1 = arith.constant 0 : index
    %3 = vector.load %arg8[%c0, %c0_1] : memref<16x32xf32, #tpu.memory_space<vmem>>, vector<16x32xf32>
    %4 = arith.index_cast %arg1 : i32 to index
    %c0_2 = arith.constant 0 : index
    %c0_3 = arith.constant 0 : index
    %5 = vector.load %arg3[%4, %c0_2, %c0_3] : memref<3x128x32xf32, #tpu.memory_space<vmem>>, vector<1x128x32xf32>
    %6 = vector.shape_cast %5 : vector<1x128x32xf32> to vector<128x32xf32>
    %7 = arith.index_cast %arg1 : i32 to index
    %c0_4 = arith.constant 0 : index
    %c0_5 = arith.constant 0 : index
    %8 = vector.load %arg4[%7, %c0_4, %c0_5] : memref<3x1x128xf32, #tpu.memory_space<vmem>>, vector<1x1x128xf32>
    %9 = vector.shape_cast %8 : vector<1x1x128xf32> to vector<1x128xf32>
    %cst = arith.constant dense<0.000000e+00> : vector<16x128xf32>
    %10 = tpu.matmul %3, %6, %cst {dimension_numbers = #tpu.dot_dimension_numbers<[1], [1], [0], [0], [0, 0, 1, 0], [], []>} : vector<16x32xf32>, vector<128x32xf32>, vector<16x128xf32> -> vector<16x128xf32>
    %cst_6 = arith.constant 2.000000e+00 : f32
    %11 = vector.broadcast %cst_6 : f32 to vector<16x128xf32>
    %12 = arith.mulf %11, %10 : vector<16x128xf32>
    %13 = vector.broadcast %9 : vector<1x128xf32> to vector<16x128xf32>
    %14 = arith.subf %12, %13 : vector<16x128xf32>
    %15 = tpu.iota {dimensions = array<i32: 1>} : vector<16x128xi32>
    %c64_i32 = arith.constant 64 : i32
    %16 = vector.broadcast %c64_i32 : i32 to vector<16x128xi32>
    %17 = arith.cmpi slt, %15, %16 : vector<16x128xi32>
    %cst_7 = arith.constant 0xFF800000 : f32
    %18 = vector.broadcast %cst_7 : f32 to vector<16x128xf32>
    %19 = arith.select %17, %14, %18 : vector<16x128xi1>, vector<16x128xf32>
    %cst_8 = arith.constant dense<0xFF800000> : vector<16xf32>
    %20 = vector.multi_reduction <maximumf>, %19, %cst_8 [1] : vector<16x128xf32> to vector<16xf32>
    %21 = vector.shape_cast %20 : vector<16xf32> to vector<16x1xf32>
    %22 = vector.broadcast %21 : vector<16x1xf32> to vector<16x128xf32>
    %23 = arith.cmpf oeq, %19, %22 : vector<16x128xf32>
    %c128_i32 = arith.constant 128 : i32
    %24 = vector.broadcast %c128_i32 : i32 to vector<16x128xi32>
    %25 = arith.select %23, %15, %24 : vector<16x128xi1>, vector<16x128xi32>
    %cst_9 = arith.constant dense<2147483647> : vector<16xi32>
    %26 = vector.multi_reduction <minsi>, %25, %cst_9 [1] : vector<16x128xi32> to vector<16xi32>
    %27 = vector.shape_cast %26 : vector<16xi32> to vector<16x1xi32>
    %28 = vector.broadcast %27 : vector<16x1xi32> to vector<16x128xi32>
    %29 = arith.cmpi eq, %15, %28 : vector<16x128xi32>
    %30 = arith.extui %29 : vector<16x128xi1> to vector<16x128xi32>
    %31 = arith.sitofp %30 : vector<16x128xi32> to vector<16x128xf32>
    %cst_10 = arith.constant dense<0.000000e+00> : vector<16x32xf32>
    %32 = tpu.matmul %31, %6, %cst_10 {dimension_numbers = #tpu.dot_dimension_numbers<[1], [0], [0], [1], [0, 0, 1, 1], [], []>} : vector<16x128xf32>, vector<128x32xf32>, vector<16x32xf32> -> vector<16x32xf32>
    %c0_11 = arith.constant 0 : index
    %c0_12 = arith.constant 0 : index
    %c0_13 = arith.constant 0 : index
    %33 = vector.load %arg6[%c0_11, %c0_12, %c0_13] : memref<1x16x32xf32, #tpu.memory_space<vmem>>, vector<1x16x32xf32>
    %34 = vector.shape_cast %33 : vector<1x16x32xf32> to vector<16x32xf32>
    %35 = vector.shape_cast %32 : vector<16x32xf32> to vector<1x16x32xf32>
    tpu.vector_store %arg6[%c0_11, %c0_12, %c0_13], %35 {strides = array<i32>} : memref<1x16x32xf32, #tpu.memory_space<vmem>>, vector<1x16x32xf32>,
    %36 = arith.subf %3, %32 : vector<16x32xf32>
    %c0_14 = arith.constant 0 : index
    %c0_15 = arith.constant 0 : index
    %37 = vector.load %arg8[%c0_14, %c0_15] : memref<16x32xf32, #tpu.memory_space<vmem>>, vector<16x32xf32>
    tpu.vector_store %arg8[%c0_14, %c0_15], %36 {strides = array<i32>} : memref<16x32xf32, #tpu.memory_space<vmem>>, vector<16x32xf32>,
    %cst_16 = arith.constant 1.000000e+00 : f32
    %38 = vector.broadcast %cst_16 : f32 to vector<1x16xf32>
    %cst_17 = arith.constant dense<0.000000e+00> : vector<1x128xf32>
    %39 = tpu.matmul %38, %31, %cst_17 {dimension_numbers = #tpu.dot_dimension_numbers<[1], [0], [0], [1], [0, 0, 1, 1], [], []>} : vector<1x16xf32>, vector<16x128xf32>, vector<1x128xf32> -> vector<1x128xf32>
    %40 = arith.subf %32, %3 : vector<16x32xf32>
    %41 = arith.mulf %40, %40 : vector<16x32xf32>
    %42 = vector.shape_cast %41 : vector<16x32xf32> to vector<1x16x32xf32>
    %cst_18 = arith.constant dense<0.000000e+00> : vector<1xf32>
    %43 = vector.multi_reduction <add>, %42, %cst_18 [1, 2] : vector<1x16x32xf32> to vector<1xf32>
    %44 = vector.shape_cast %43 : vector<1xf32> to vector<1x1x1xf32>
    %45 = vector.extract %44[0, 0, 0] : f32 from vector<1x1x1xf32>
    %46 = tpu.iota {dimensions = array<i32: 1>} : vector<1x128xi32>
    %c64_i32_19 = arith.constant 64 : i32
    %47 = vector.broadcast %c64_i32_19 : i32 to vector<1x128xi32>
    %48 = arith.cmpi eq, %46, %47 : vector<1x128xi32>
    %49 = vector.broadcast %45 : f32 to vector<1x128xf32>
    %50 = arith.select %48, %49, %39 : vector<1x128xi1>, vector<1x128xf32>
    %c0_20 = arith.constant 0 : index
    %51 = arith.index_cast %arg1 : i32 to index
    %c0_21 = arith.constant 0 : index
    %52 = vector.load %arg7[%c0_20, %51, %c0_21] : memref<1x3x128xf32, #tpu.memory_space<vmem>>, vector<1x1x128xf32>
    %53 = vector.shape_cast %52 : vector<1x1x128xf32> to vector<1x128xf32>
    %54 = vector.shape_cast %50 : vector<1x128xf32> to vector<1x1x128xf32>
    tpu.vector_store %arg7[%c0_20, %51, %c0_21], %54 {strides = array<i32>} : memref<1x3x128xf32, #tpu.memory_space<vmem>>, vector<1x1x128xf32>,
    %c2_i32 = arith.constant 2 : i32
    %55 = arith.cmpi eq, %arg1, %c2_i32 : i32
    %56 = arith.extui %55 : i1 to i32
    %c0_i32_22 = arith.constant 0 : i32
    %57 = arith.cmpi ne, %56, %c0_i32_22 : i32
    scf.if %57 {
      %c0_23 = arith.constant 0 : index
      %c0_24 = arith.constant 0 : index
      %58 = vector.load %arg2[%c0_23, %c0_24] : memref<16x32xf32, #tpu.memory_space<vmem>>, vector<16x32xf32>
      %c0_25 = arith.constant 0 : index
      %c0_26 = arith.constant 0 : index
      %59 = vector.load %arg8[%c0_25, %c0_26] : memref<16x32xf32, #tpu.memory_space<vmem>>, vector<16x32xf32>
      %60 = arith.subf %58, %59 : vector<16x32xf32>
      %c0_27 = arith.constant 0 : index
      %c0_28 = arith.constant 0 : index
      %61 = vector.load %arg5[%c0_27, %c0_28] : memref<16x32xf32, #tpu.memory_space<vmem>>, vector<16x32xf32>
      tpu.vector_store %arg5[%c0_27, %c0_28], %60 {strides = array<i32>} : memref<16x32xf32, #tpu.memory_space<vmem>>, vector<16x32xf32>,
    } else {
    }
    return
  }
  func.func @transform_0(%arg0: i32, %arg1: i32) -> (i32, i32) {
    %c0_i32 = arith.constant 0 : i32
    %c0_i32_0 = arith.constant 0 : i32
    return %arg0, %c0_i32 : i32, i32
  }
  func.func @transform_1(%arg0: i32, %arg1: i32) -> (i32, i32, i32) {
    %c0_i32 = arith.constant 0 : i32
    %c0_i32_0 = arith.constant 0 : i32
    %c0_i32_1 = arith.constant 0 : i32
    %c0_i32_2 = arith.constant 0 : i32
    return %c0_i32, %c0_i32_0, %c0_i32_1 : i32, i32, i32
  }
  func.func @transform_2(%arg0: i32, %arg1: i32) -> (i32, i32, i32) {
    %c0_i32 = arith.constant 0 : i32
    %c0_i32_0 = arith.constant 0 : i32
    %c0_i32_1 = arith.constant 0 : i32
    %c0_i32_2 = arith.constant 0 : i32
    return %c0_i32, %c0_i32_0, %c0_i32_1 : i32, i32, i32
  }
  func.func @transform_3(%arg0: i32, %arg1: i32) -> (i32, i32) {
    %c0_i32 = arith.constant 0 : i32
    %c0_i32_0 = arith.constant 0 : i32
    return %arg0, %c0_i32 : i32, i32
  }
  func.func @transform_4(%arg0: i32, %arg1: i32) -> (i32, i32, i32) {
    %c0_i32 = arith.constant 0 : i32
    %c0_i32_0 = arith.constant 0 : i32
    return %arg1, %arg0, %c0_i32 : i32, i32, i32
  }
  func.func @transform_5(%arg0: i32, %arg1: i32) -> (i32, i32, i32) {
    %c0_i32 = arith.constant 0 : i32
    %c0_i32_0 = arith.constant 0 : i32
    %c0_i32_1 = arith.constant 0 : i32
    return %arg0, %c0_i32, %c0_i32_0 : i32, i32, i32
  }
}

</mosaic_0001>

<llo_original>
// kernel: tpu_custom_call.1
$region0: #{tpu_custom_call.1}
  #allocation0 [shape = 'u32[]', space=smem, size = 0x4, offset = 0x4, fixed_abs, tag = 'smem constant byte address 0x4 - core index']
  #allocation1 [shape = 'u32[144,128]{1,0:T(1,128)}', space=vmem, size = 0x12000, scoped, tag = 'internal scratch']
  #allocation2 [shape = 'f32[16,32]{1,0:T(8,128)}', space=vmem, size = 0x2000, scoped, tag = 'scratch operand']
  %s0 = inlined_call_operand.vmem [shape: f32[16,32], index: 0, kind: input, shape index: {}]
  %s1 = inlined_call_operand.vmem [shape: f32[3,128,32], index: 1, kind: input, shape index: {}]
  %s2 = inlined_call_operand.vmem [shape: f32[3,1,128], index: 2, kind: input, shape index: {}]
  %s3 = inlined_call_operand.hbm [shape: f32[16,32], index: 3, kind: output, shape index: {0}]
  %s4 = inlined_call_operand.hbm [shape: f32[3,16,32], index: 4, kind: output, shape index: {1}]
  %s5 = inlined_call_operand.vmem [shape: f32[1,3,128], index: 5, kind: output, shape index: {2}]
  %6 = xla_tuple %s3, %s4, %s5
  %s7 = sld [smem:[#allocation0]]
  $region69: #{tpu_custom_call.1} parent=0
    _
  %s9 = ssub.s32 1, %s7
  %s10 = scalar_select 0, %s9, %s7
  $region1: #{tpu_custom_call.1} parent=0
    #allocation3 [shape = 'u8[8192]{0}', space=vmem, size = 0x2000, scoped, tag = 'output window, operand 0, single buffered']
    #allocation4 [shape = 's32[2]{0}', space=sflag, size = 0x8, scoped, tag = 'scoped memory for tpu_custom_call.1']
    #allocation5 [shape = 'u8[16384]{0}', space=vmem, size = 0x4000, scoped, tag = 'output window, operand 1']
    #allocation6 [shape = 's32[2]{0}', space=sflag, size = 0x8, scoped, tag = 'scoped memory for tpu_custom_call.1']
    %11 = vsyncpa [#allocation4], 0
    %12 = vsyncpa [#allocation6], 0
    %s13 = scalar_lea.sflag [#allocation6], 1
    %14 = vsyncpa %s13, 0
    loop: start=0, step=1, limit=5
    $region2: #{tpu_custom_call.1} parent=1 // loop_pre_header
      _
    $region3: #{tpu_custom_call.1} parent=1 // loop_header
      %s16 = sphi 0, %s20
      %p17 = scmp.ge.s32.totalorder %s16, 5
      %s23 = sphi 0, %s35
      %s24 = sphi 0, %s31
      %s25 = sphi 0, %s23
      %s26 = sphi 0, %s24
      %s27 = sphi 0, %s25
      %s28 = sphi 0, %s26
      %s38 = sphi 0, %s40
      %s41 = sphi 0, %s38
      %s42 = sphi 0, %s41
      %s58 = sphi 0, %s42
      %s62 = sphi 0, %s62
      %s64 = sphi 0, %s62
      %s65 = sphi 0, %s64
      %s79 = sphi 0, %s65
      %s83 = sphi 0, %s83
      %s85 = sphi 0, %s83
      %s86 = sphi 0, %s85
      %s100 = sphi 0, %s86
      %s106 = sphi 0, %s108
      %s109 = sphi 0, %s106
      %s110 = sphi 0, %s109
      %s126 = sphi 0, %s110
      %s134 = sphi 0, %s136
      %s137 = sphi 0, %s134
      %s138 = sphi 0, %s137
      %s154 = sphi 0, %s138
      %s160 = sphi 0, %s162
      %s163 = sphi 0, %s160
      %s164 = sphi 0, %s163
      %s180 = sphi 0, %s164
    $region4: #{tpu_custom_call.1} parent=1 // loop_header_branch
      %19 = sbr.rel (%p17) target = $region8
    $region5: #{tpu_custom_call.1} parent=1 // loop_body
      %s21 = ssub.s32 %s16, 1
      %s22 = ssub.s32 %s16, 2
      %s29 = sadd.s32 1, %s24
      %p30 = scmp.ge.s32.totalorder %s29, 3
      %s31 = scalar_select %p30, 0, %s29
      %s32 = sadd.s32 1, %s23
      %s33 = scalar_select %p30, %s32, %s23
      %p34 = scmp.ge.s32.totalorder %s33, 1
      %s35 = scalar_select %p34, 0, %s33
      %s36 = ssub.s32 %s23, %s35
      %p37 = scmp.eq.s32.totalorder %s36, 0
      %s39 = sadd.s32 %s38, 1
      %s40 = scalar_select %p37, %s38, %s39
      %p43 = pneg %p37
      %p44 = scmp.eq.s32.totalorder %s16, 2
      %p45 = por %p43, %p44
      %p46 = scmp.ne.s32.totalorder %s38, %s41
      %p47 = scmp.eq.s32.totalorder %s16, 0
      %p48 = por %p46, %p47
      %p49 = scmp.ne.s32.totalorder %s38, %s41
      %p50 = scmp.eq.s32.totalorder %s21, 2
      %p51 = por %p49, %p50
      %p52 = scmp.ne.s32.totalorder %s41, %s42
      %p53 = scmp.eq.s32.totalorder %s21, 0
      %p54 = por %p52, %p53
      %p55 = scmp.ne.s32.totalorder %s41, %s42
      %p56 = scmp.eq.s32.totalorder %s22, 2
      %p57 = por %p55, %p56
      %p59 = scmp.ne.s32.totalorder %s42, %s58
      %p60 = scmp.eq.s32.totalorder %s22, 0
      %p61 = por %p59, %p60
      %s63 = sadd.s32 %s62, 1
      %p66 = scmp.eq.s32.totalorder %s16, 2
      %p67 = scmp.ne.s32.totalorder %s62, %s64
      %p68 = scmp.eq.s32.totalorder %s16, 0
      %p69 = por %p67, %p68
      %p70 = scmp.ne.s32.totalorder %s62, %s64
      %p71 = scmp.eq.s32.totalorder %s21, 2
      %p72 = por %p70, %p71
      %p73 = scmp.ne.s32.totalorder %s64, %s65
      %p74 = scmp.eq.s32.totalorder %s21, 0
      %p75 = por %p73, %p74
      %p76 = scmp.ne.s32.totalorder %s64, %s65
      %p77 = scmp.eq.s32.totalorder %s22, 2
      %p78 = por %p76, %p77
      %p80 = scmp.ne.s32.totalorder %s65, %s79
      %p81 = scmp.eq.s32.totalorder %s22, 0
      %p82 = por %p80, %p81
      %s84 = sadd.s32 %s83, 1
      %p87 = scmp.eq.s32.totalorder %s16, 2
      %p88 = scmp.ne.s32.totalorder %s83, %s85
      %p89 = scmp.eq.s32.totalorder %s16, 0
      %p90 = por %p88, %p89
      %p91 = scmp.ne.s32.totalorder %s83, %s85
      %p92 = scmp.eq.s32.totalorder %s21, 2
      %p93 = por %p91, %p92
      %p94 = scmp.ne.s32.totalorder %s85, %s86
      %p95 = scmp.eq.s32.totalorder %s21, 0
      %p96 = por %p94, %p95
      %p97 = scmp.ne.s32.totalorder %s85, %s86
      %p98 = scmp.eq.s32.totalorder %s22, 2
      %p99 = por %p97, %p98
      %p101 = scmp.ne.s32.totalorder %s86, %s100
      %p102 = scmp.eq.s32.totalorder %s22, 0
      %p103 = por %p101, %p102
      %s104 = ssub.s32 %s23, %s35
      %p105 = scmp.eq.s32.totalorder %s104, 0
      %s107 = sadd.s32 %s106, 1
      %s108 = scalar_select %p105, %s106, %s107
      %p111 = pneg %p105
      %p112 = scmp.eq.s32.totalorder %s16, 2
      %p113 = por %p111, %p112
      %p114 = scmp.ne.s32.totalorder %s106, %s109
      %p115 = scmp.eq.s32.totalorder %s16, 0
      %p116 = por %p114, %p115
      %p117 = scmp.ne.s32.totalorder %s106, %s109
      %p118 = scmp.eq.s32.totalorder %s21, 2
      %p119 = por %p117, %p118
      %p120 = scmp.ne.s32.totalorder %s109, %s110
      %p121 = scmp.eq.s32.totalorder %s21, 0
      %p122 = por %p120, %p121
      %p123 = scmp.ne.s32.totalorder %s109, %s110
      %p124 = scmp.eq.s32.totalorder %s22, 2
      %p125 = por %p123, %p124
      %p127 = scmp.ne.s32.totalorder %s110, %s126
      %p128 = scmp.eq.s32.totalorder %s22, 0
      %p129 = por %p127, %p128
      %s130 = ssub.s32 %s24, %s31
      %s131 = ssub.s32 %s23, %s35
      %s132 = sor.u32 %s130, %s131
      %p133 = scmp.eq.s32.totalorder %s132, 0
      %s135 = sadd.s32 %s134, 1
      %s136 = scalar_select %p133, %s134, %s135
      %p139 = pneg %p133
      %p140 = scmp.eq.s32.totalorder %s16, 2
      %p141 = por %p139, %p140
      %p142 = scmp.ne.s32.totalorder %s134, %s137
      %p143 = scmp.eq.s32.totalorder %s16, 0
      %p144 = por %p142, %p143
      %p145 = scmp.ne.s32.totalorder %s134, %s137
      %p146 = scmp.eq.s32.totalorder %s21, 2
      %p147 = por %p145, %p146
      %p148 = scmp.ne.s32.totalorder %s137, %s138
      %p149 = scmp.eq.s32.totalorder %s21, 0
      %p150 = por %p148, %p149
      %p151 = scmp.ne.s32.totalorder %s137, %s138
      %p152 = scmp.eq.s32.totalorder %s22, 2
      %p153 = por %p151, %p152
      %p155 = scmp.ne.s32.totalorder %s138, %s154
      %p156 = scmp.eq.s32.totalorder %s22, 0
      %p157 = por %p155, %p156
      %s158 = ssub.s32 %s23, %s35
      %p159 = scmp.eq.s32.totalorder %s158, 0
      %s161 = sadd.s32 %s160, 1
      %s162 = scalar_select %p159, %s160, %s161
      %p165 = pneg %p159
      %p166 = scmp.eq.s32.totalorder %s16, 2
      %p167 = por %p165, %p166
      %p168 = scmp.ne.s32.totalorder %s160, %s163
      %p169 = scmp.eq.s32.totalorder %s16, 0
      %p170 = por %p168, %p169
      %p171 = scmp.ne.s32.totalorder %s160, %s163
      %p172 = scmp.eq.s32.totalorder %s21, 2
      %p173 = por %p171, %p172
      %p174 = scmp.ne.s32.totalorder %s163, %s164
      %p175 = scmp.eq.s32.totalorder %s21, 0
      %p176 = por %p174, %p175
      %p177 = scmp.ne.s32.totalorder %s163, %s164
      %p178 = scmp.eq.s32.totalorder %s22, 2
      %p179 = por %p177, %p178
      %p181 = scmp.ne.s32.totalorder %s164, %s180
      %p182 = scmp.eq.s32.totalorder %s22, 0
      %p183 = por %p181, %p182
      %p184 = scmp.le.s32.totalorder 1, %s16
      %p185 = scmp.lt.s32.totalorder %s16, 4
      %p186 = pnand %p184, %p185
      %p187 = pneg %p186
      // Predicated region
      $region9: #{tpu_custom_call.1} parent=5 // pred_check
        _
      $region10: #{tpu_custom_call.1} parent=5 // pred_check_branch
        %189 = sbr.rel (%p186) target = $region12
      $region11: #{tpu_custom_call.1} parent=5 // pred_region
        %s190 = ssub.s32 %s16, 1
        // Predicated region
        $region13: #{tpu_custom_call.1} parent=11 // pred_check
          %p191 = pneg %p54
        $region14: #{tpu_custom_call.1} parent=11 // pred_check_branch
          %193 = sbr.rel (%p191) target = $region16
        $region15: #{tpu_custom_call.1} parent=11 // pred_region
          %s194 = smul.u32 2, %s25
          %p195 = scmp.lt.s32.totalorder %s194, 1
          %s196 = scalar_select %p195, %s194, 1
          %s197 = smul.addr %s196, 8
          %s198 = scalar_lea.vmem %s0, %s197
          %s199 = smul.u32 2, %s25
        $region16: #{tpu_custom_call.1} parent=11 // pred_fallthru
          _
        // Predicated region
        $region17: #{tpu_custom_call.1} parent=11 // pred_check
          %p200 = pneg %p75
        $region18: #{tpu_custom_call.1} parent=11 // pred_check_branch
          %202 = sbr.rel (%p200) target = $region20
        $region19: #{tpu_custom_call.1} parent=11 // pred_region
          _
        $region20: #{tpu_custom_call.1} parent=11 // pred_fallthru
          _
        // Predicated region
        $region21: #{tpu_custom_call.1} parent=11 // pred_check
          %p203 = pneg %p96
        $region22: #{tpu_custom_call.1} parent=11 // pred_check_branch
          %205 = sbr.rel (%p203) target = $region24
        $region23: #{tpu_custom_call.1} parent=11 // pred_region
          _
        $region24: #{tpu_custom_call.1} parent=11 // pred_fallthru
          _
      $region12: #{tpu_custom_call.1} parent=5 // pred_fallthru
        _
      %p206 = scmp.lt.s32.totalorder %s16, 3
      // Predicated region
      $region25: #{tpu_custom_call.1} parent=5 // pred_check
        %p207 = pneg %p206
      $region26: #{tpu_custom_call.1} parent=5 // pred_check_branch
        %209 = sbr.rel (%p207) target = $region28
      $region27: #{tpu_custom_call.1} parent=5 // pred_region
        _
      $region28: #{tpu_custom_call.1} parent=5 // pred_fallthru
        _
      %p210 = scmp.le.s32.totalorder 1, %s16
      %p211 = scmp.lt.s32.totalorder %s16, 4
      %p212 = pnand %p210, %p211
      %p213 = pneg %p212
      // Predicated region
      $region29: #{tpu_custom_call.1} parent=5 // pred_check
        _
      $region30: #{tpu_custom_call.1} parent=5 // pred_check_branch
        %215 = sbr.rel (%p212) target = $region32
      $region31: #{tpu_custom_call.1} parent=5 // pred_region
        %s216 = ssub.s32 %s16, 1
        %s217 = smul.u32 2, %s25
        %p218 = scmp.lt.s32.totalorder %s217, 1
        %s219 = scalar_select %p218, %s217, 1
        %s220 = smul.addr %s219, 8
        %s221 = scalar_lea.vmem %s0, %s220
        %p222 = pneg %p54
        %p223 = pneg %p51
        %p224 = pneg %p75
        %p225 = pneg %p72
        %p226 = pneg %p96
        %p227 = pneg %p93
        %p228 = pneg %p122
        %p229 = pneg %p119
        %p230 = pneg %p150
        %p231 = pneg %p147
        %s232 = sand.u32 %s137, 1
        %s233 = scalar_lea.sflag [#allocation6], %s232
        %s234 = sand.u32 %s137, 1
        %s235 = smul.addr %s234, 16
        %s236 = scalar_lea.vmem [#allocation5], %s235
        %p237 = pneg %p176
        %p238 = pneg %p173
        %p239 = scmp.lt.s32.totalorder %s25, 0
        %s240 = scalar_select %p239, %s25, 0
        %s241 = smul.addr %s240, 4
        %s242 = scalar_lea.vmem %s5, %s241
        %s243 = smul.u32 2, %s25
        %p244 = scmp.lt.s32.totalorder %s243, 1
        %s245 = scalar_select %p244, %s243, 1
        %s246 = smul.addr %s245, 8
        %s247 = scalar_lea.vmem %s0, %s246
        %s248 = smul.u32 2, %s25
        %s249 = smul.u32 2, %s25
        %s250 = smul.u32 2, %s25
        %p251 = scmp.lt.s32.totalorder %s25, 0
        %s252 = scalar_select %p251, %s25, 0
        %s253 = smul.addr %s252, 4
        %s254 = scalar_lea.vmem %s5, %s253
        %p255 = scmp.eq.s32.totalorder %s26, 0
        // Predicated region
        $region33: #{tpu_custom_call.1} parent=31 // pred_check
          %p256 = pneg %p255
        $region34: #{tpu_custom_call.1} parent=31 // pred_check_branch
          %258 = sbr.rel (%p256) target = $region36
        $region35: #{tpu_custom_call.1} parent=31 // pred_region
          %v259 = vld [vmem:[%s247] sm:$0xff]
          %v260 = vld [vmem:[%s247 + $0x8] sm:$0xff]
          %vm261 = vcmask 261120
          %262 = vst.msk [vmem:[#allocation2] sm:$0xff] %vm261, %v259
          %263 = vst.msk [vmem:[#allocation2 + $0x8] sm:$0xff] %vm261, %v260
        $region36: #{tpu_custom_call.1} parent=31 // pred_fallthru
          _
        %v264 = vld [vmem:[#allocation2] sm:$0xff]
        %v265 = vld [vmem:[#allocation2 + $0x8] sm:$0xff]
        %s266 = smul.u32 %s26, 128
        %s267 = scalar_lea.vmem %s1, %s266
        %v268 = vld [vmem:[%s267] sm:$0xff]
        %v269 = vld [vmem:[%s267 + $0x8] sm:$0xff]
        %v270 = vld [vmem:[%s267 + $0x10] sm:$0xff]
        %v271 = vld [vmem:[%s267 + $0x18] sm:$0xff]
        %v272 = vld [vmem:[%s267 + $0x20] sm:$0xff]
        %v273 = vld [vmem:[%s267 + $0x28] sm:$0xff]
        %v274 = vld [vmem:[%s267 + $0x30] sm:$0xff]
        %v275 = vld [vmem:[%s267 + $0x38] sm:$0xff]
        %v276 = vld [vmem:[%s267 + $0x40] sm:$0xff]
        %v277 = vld [vmem:[%s267 + $0x48] sm:$0xff]
        %v278 = vld [vmem:[%s267 + $0x50] sm:$0xff]
        %v279 = vld [vmem:[%s267 + $0x58] sm:$0xff]
        %v280 = vld [vmem:[%s267 + $0x60] sm:$0xff]
        %v281 = vld [vmem:[%s267 + $0x68] sm:$0xff]
        %v282 = vld [vmem:[%s267 + $0x70] sm:$0xff]
        %v283 = vld [vmem:[%s267 + $0x78] sm:$0xff]
        %s284 = scalar_lea.vmem %s2, %s26
        %v285 = vld [vmem:[%s284] sm:$0x1]
        %vm286 = vcmask 261120
        %v288 = vsel %vm286, %v264, 0
        %v291 = vsel %vm286, %v265, 0
        %v294 = vsel %vm286, %v268, 0
        %v297 = vsel %vm286, %v269, 0
        %v300 = vsel %vm286, %v270, 0
        %v303 = vsel %vm286, %v271, 0
        %v306 = vsel %vm286, %v272, 0
        %v309 = vsel %vm286, %v273, 0
        %v312 = vsel %vm286, %v274, 0
        %v315 = vsel %vm286, %v275, 0
        %v318 = vsel %vm286, %v276, 0
        %v321 = vsel %vm286, %v277, 0
        %v324 = vsel %vm286, %v278, 0
        %v327 = vsel %vm286, %v279, 0
        %v330 = vsel %vm286, %v280, 0
        %v333 = vsel %vm286, %v281, 0
        %v336 = vsel %vm286, %v282, 0
        %v339 = vsel %vm286, %v283, 0
        %341 = vmatprep.subr.mxu0 0.0
        %342 = vmatpush1.xpose.msra.mxu0 %v294
        %343 = vmatprep.subr.mxu0 0.0
        %344 = vmatpush1.xpose.msra.mxu0 %v297
        %345 = vmatprep.subr.mxu0 0.0
        %346 = vmatpush1.xpose.msra.mxu0 %v300
        %347 = vmatprep.subr.mxu0 0.0
        %348 = vmatpush1.xpose.msra.mxu0 %v303
        %349 = vmatprep.subr.mxu0 0.0
        %350 = vmatpush1.xpose.msra.mxu0 %v306
        %351 = vmatprep.subr.mxu0 0.0
        %352 = vmatpush1.xpose.msra.mxu0 %v309
        %353 = vmatprep.subr.mxu0 0.0
        %354 = vmatpush1.xpose.msra.mxu0 %v312
        %355 = vmatprep.subr.mxu0 0.0
        %356 = vmatpush1.xpose.msra.mxu0 %v315
        %357 = vmatprep.subr.mxu0 0.0
        %358 = vmatpush1.xpose.msra.mxu0 %v318
        %359 = vmatprep.subr.mxu0 0.0
        %360 = vmatpush1.xpose.msra.mxu0 %v321
        %361 = vmatprep.subr.mxu0 0.0
        %362 = vmatpush1.xpose.msra.mxu0 %v324
        %363 = vmatprep.subr.mxu0 0.0
        %364 = vmatpush1.xpose.msra.mxu0 %v327
        %365 = vmatprep.subr.mxu0 0.0
        %366 = vmatpush1.xpose.msra.mxu0 %v330
        %367 = vmatprep.subr.mxu0 0.0
        %368 = vmatpush1.xpose.msra.mxu0 %v333
        %369 = vmatprep.subr.mxu0 0.0
        %370 = vmatpush1.xpose.msra.mxu0 %v336
        %371 = vmatprep.subr.mxu0 0.0
        %372 = vmatpush1.xpose.msra.mxu0 %v339
        %373 = vmatprep.subr.mxu0 0.0
        %374 = vmatpush1.xpose.msra.mxu0 0.0
        %375 = vmatprep.subr.mxu0 0.0
        %376 = vmatpush1.xpose.msra.mxu0 0.0
        %377 = vmatprep.subr.mxu0 0.0
        %378 = vmatpush1.xpose.msra.mxu0 0.0
        %379 = vmatprep.subr.mxu0 0.0
        %380 = vmatpush1.xpose.msra.mxu0 0.0
        %381 = vmatprep.subr.mxu0 0.0
        %382 = vmatpush1.xpose.msra.mxu0 0.0
        %383 = vmatprep.subr.mxu0 0.0
        %384 = vmatpush1.xpose.msra.mxu0 0.0
        %385 = vmatprep.subr.mxu0 0.0
        %386 = vmatpush1.xpose.msra.mxu0 0.0
        %387 = vmatprep.subr.mxu0 0.0
        %388 = vmatpush1.xpose.msra.mxu0 0.0
        %389 = vmatprep.subr.mxu0 0.0
        %390 = vmatpush1.xpose.msra.mxu0 0.0
        %391 = vmatprep.subr.mxu0 0.0
        %392 = vmatpush1.xpose.msra.mxu0 0.0
        %393 = vmatprep.subr.mxu0 0.0
        %394 = vmatpush1.xpose.msra.mxu0 0.0
        %395 = vmatprep.subr.mxu0 0.0
        %396 = vmatpush1.xpose.msra.mxu0 0.0
        %397 = vmatprep.subr.mxu0 0.0
        %398 = vmatpush1.xpose.msra.mxu0 0.0
        %399 = vmatprep.subr.mxu0 0.0
        %400 = vmatpush1.xpose.msra.mxu0 0.0
        %401 = vmatprep.subr.mxu0 0.0
        %402 = vmatpush1.xpose.msra.mxu0 0.0
        %403 = vmatprep.subr.mxu0 0.0
        %404 = vmatpush1.xpose.msra.mxu0 0.0
        %405 = vmatprep.mubr.f32.mxu0 0.0
        %406 = vmatmul.mubr.f32.gmra.mrb[0].mxu0 %v288
        %v407 = vpop.f32.mrb[0].mxu0
        %v408 = vadd.f32 0.0, %v407
        %v409 = vpop.f32.mrb[0].mxu0
        %410 = vmatprep.mubr.f32.mxu0 0.0
        %411 = vmatmul.mubr.f32.gmra.mrb[0].mxu0 %v291
        %v412 = vpop.f32.mrb[0].mxu0
        %v413 = vadd.f32 0.0, %v412
        %v414 = vpop.f32.mrb[0].mxu0
        %415 = vdwg.mxu0
        %v416 = vmul.f32 %v408, 2.0
        %v417 = vmul.f32 %v413, 2.0
        %v419 = vlaneseq
        %v420 = vshrl.u32 %v419, 7
        %v421 = vsub.s32 0, %v420
        %v422 = vrot.slane %v285, %v421
        %v424 = vsub.f32 %v416, %v422
        %v425 = vsub.f32 %v417, %v422
        %v426 = vlaneseq
        %v427 = vand.u32 %v426, 127
        %vm428 = vcmp.lt.s32.totalorder %v427, 64
        %v429 = vsel %vm428, %v424, -inf
        %v430 = vsel %vm428, %v425, -inf
        %431 = vmax.xlane.f32.xlu0 %v429
        %v432 = vpop.xlane.xlu0 %431
        %433 = vmax.xlane.f32.xlu0 %v430
        %v434 = vpop.xlane.xlu0 %433
        %vm435 = vcmp.eq.f32.partialorder %v429, %v432
        %vm436 = vcmp.eq.f32.partialorder %v430, %v434
        %v437 = vsel %vm435, %v427, 128
        %v438 = vsel %vm436, %v427, 128
        %v439 = vand.u32 %v437, 65535
        %v440 = vshra.s32 %v437, 16
        %v441 = vcvt.s32.f32 %v439
        %v442 = vcvt.s32.f32 %v440
        %443 = vmin.xlane.f32.xlu0 %v442
        %v444 = vpop.xlane.xlu0 %443
        %vm445 = vcmp.eq.f32.partialorder %v442, %v444
        %v446 = vsel %vm445, %v441, inf
        %447 = vmin.xlane.f32.xlu0 %v446
        %v448 = vpop.xlane.xlu0 %447
        %v449 = vcvt.f32.s32 %v448
        %v450 = vcvt.f32.s32 %v444
        %v451 = vshll.u32 %v450, 16
        %v452 = vadd.s32 %v451, %v449
        %v453 = vand.u32 %v438, 65535
        %v454 = vshra.s32 %v438, 16
        %v455 = vcvt.s32.f32 %v453
        %v456 = vcvt.s32.f32 %v454
        %457 = vmin.xlane.f32.xlu0 %v456
        %v458 = vpop.xlane.xlu0 %457
        %vm459 = vcmp.eq.f32.partialorder %v456, %v458
        %v460 = vsel %vm459, %v455, inf
        %461 = vmin.xlane.f32.xlu0 %v460
        %v462 = vpop.xlane.xlu0 %461
        %v463 = vcvt.f32.s32 %v462
        %v464 = vcvt.f32.s32 %v458
        %v465 = vshll.u32 %v464, 16
        %v466 = vadd.s32 %v465, %v463
        %vm467 = vcmp.eq.s32.totalorder %v427, %v452
        %vm468 = vcmp.eq.s32.totalorder %v427, %v466
        %v469 = vsel %vm467, 1, 0
        %v470 = vsel %vm468, 1, 0
        %v471 = vcvt.s32.f32 %v469
        %v472 = vcvt.s32.f32 %v470
        %473 = vmatprep.subr.mxu0 0.0
        %474 = vmatpush1.msra.mxu0 %v268
        %475 = vmatprep.subr.mxu0 0.0
        %476 = vmatpush1.msra.mxu0 %v269
        %477 = vmatprep.subr.mxu0 0.0
        %478 = vmatpush1.msra.mxu0 %v270
        %479 = vmatprep.subr.mxu0 0.0
        %480 = vmatpush1.msra.mxu0 %v271
        %481 = vmatprep.subr.mxu0 0.0
        %482 = vmatpush1.msra.mxu0 %v272
        %483 = vmatprep.subr.mxu0 0.0
        %484 = vmatpush1.msra.mxu0 %v273
        %485 = vmatprep.subr.mxu0 0.0
        %486 = vmatpush1.msra.mxu0 %v274
        %487 = vmatprep.subr.mxu0 0.0
        %488 = vmatpush1.msra.mxu0 %v275
        %489 = vmatprep.subr.mxu0 0.0
        %490 = vmatpush1.msra.mxu0 %v276
        %491 = vmatprep.subr.mxu0 0.0
        %492 = vmatpush1.msra.mxu0 %v277
        %493 = vmatprep.subr.mxu0 0.0
        %494 = vmatpush1.msra.mxu0 %v278
        %495 = vmatprep.subr.mxu0 0.0
        %496 = vmatpush1.msra.mxu0 %v279
        %497 = vmatprep.subr.mxu0 0.0
        %498 = vmatpush1.msra.mxu0 %v280
        %499 = vmatprep.subr.mxu0 0.0
        %500 = vmatpush1.msra.mxu0 %v281
        %501 = vmatprep.subr.mxu0 0.0
        %502 = vmatpush1.msra.mxu0 %v282
        %503 = vmatprep.subr.mxu0 0.0
        %504 = vmatpush1.msra.mxu0 %v283
        %505 = vmatprep.subr.mxu0 0.0
        %506 = vmatpush1.msra.mxu0 0.0
        %507 = vmatprep.subr.mxu0 0.0
        %508 = vmatpush1.msra.mxu0 0.0
        %509 = vmatprep.subr.mxu0 0.0
        %510 = vmatpush1.msra.mxu0 0.0
        %511 = vmatprep.subr.mxu0 0.0
        %512 = vmatpush1.msra.mxu0 0.0
        %513 = vmatprep.subr.mxu0 0.0
        %514 = vmatpush1.msra.mxu0 0.0
        %515 = vmatprep.subr.mxu0 0.0
        %516 = vmatpush1.msra.mxu0 0.0
        %517 = vmatprep.subr.mxu0 0.0
        %518 = vmatpush1.msra.mxu0 0.0
        %519 = vmatprep.subr.mxu0 0.0
        %520 = vmatpush1.msra.mxu0 0.0
        %521 = vmatprep.subr.mxu0 0.0
        %522 = vmatpush1.msra.mxu0 0.0
        %523 = vmatprep.subr.mxu0 0.0
        %524 = vmatpush1.msra.mxu0 0.0
        %525 = vmatprep.subr.mxu0 0.0
        %526 = vmatpush1.msra.mxu0 0.0
        %527 = vmatprep.subr.mxu0 0.0
        %528 = vmatpush1.msra.mxu0 0.0
        %529 = vmatprep.subr.mxu0 0.0
        %530 = vmatpush1.msra.mxu0 0.0
        %531 = vmatprep.subr.mxu0 0.0
        %532 = vmatpush1.msra.mxu0 0.0
        %533 = vmatprep.subr.mxu0 0.0
        %534 = vmatpush1.msra.mxu0 0.0
        %535 = vmatprep.subr.mxu0 0.0
        %536 = vmatpush1.msra.mxu0 0.0
        %537 = vmatprep.mubr.f32.mxu0 0.0
        %538 = vmatmul.mubr.f32.gmra.mrb[0].mxu0 %v471
        %v539 = vpop.f32.mrb[0].mxu0
        %v540 = vadd.f32 0.0, %v539
        %v541 = vpop.f32.mrb[0].mxu0
        %542 = vmatprep.mubr.f32.mxu0 0.0
        %543 = vmatmul.mubr.f32.gmra.mrb[0].mxu0 %v472
        %v544 = vpop.f32.mrb[0].mxu0
        %v545 = vadd.f32 0.0, %v544
        %v546 = vpop.f32.mrb[0].mxu0
        %547 = vdwg.mxu0
        %548 = vst.msk [vmem:[%s236] sm:$0xff] %vm286, %v540
        %549 = vst.msk [vmem:[%s236 + $0x8] sm:$0xff] %vm286, %v545
        %v550 = vsub.f32 %v264, %v540
        %v551 = vsub.f32 %v265, %v545
        %552 = vst.msk [vmem:[#allocation2] sm:$0xff] %vm286, %v550
        %553 = vst.msk [vmem:[#allocation2 + $0x8] sm:$0xff] %vm286, %v551
        %vm554 = vcmask 130048
        %v556 = vsel %vm554, 1.0, 0
        %558 = vmatprep.subr.mxu0 0.0
        %559 = vmatpush1.msra.mxu0 %v471
        %560 = vmatprep.subr.mxu0 0.0
        %561 = vmatpush1.msra.mxu0 %v472
        %562 = vmatprep.subr.mxu0 0.0
        %563 = vmatpush1.msra.mxu0 0.0
        %564 = vmatprep.subr.mxu0 0.0
        %565 = vmatpush1.msra.mxu0 0.0
        %566 = vmatprep.subr.mxu0 0.0
        %567 = vmatpush1.msra.mxu0 0.0
        %568 = vmatprep.subr.mxu0 0.0
        %569 = vmatpush1.msra.mxu0 0.0
        %570 = vmatprep.subr.mxu0 0.0
        %571 = vmatpush1.msra.mxu0 0.0
        %572 = vmatprep.subr.mxu0 0.0
        %573 = vmatpush1.msra.mxu0 0.0
        %574 = vmatprep.subr.mxu0 0.0
        %575 = vmatpush1.msra.mxu0 0.0
        %576 = vmatprep.subr.mxu0 0.0
        %577 = vmatpush1.msra.mxu0 0.0
        %578 = vmatprep.subr.mxu0 0.0
        %579 = vmatpush1.msra.mxu0 0.0
        %580 = vmatprep.subr.mxu0 0.0
        %581 = vmatpush1.msra.mxu0 0.0
        %582 = vmatprep.subr.mxu0 0.0
        %583 = vmatpush1.msra.mxu0 0.0
        %584 = vmatprep.subr.mxu0 0.0
        %585 = vmatpush1.msra.mxu0 0.0
        %586 = vmatprep.subr.mxu0 0.0
        %587 = vmatpush1.msra.mxu0 0.0
        %588 = vmatprep.subr.mxu0 0.0
        %589 = vmatpush1.msra.mxu0 0.0
        %590 = vmatprep.subr.mxu0 0.0
        %591 = vmatpush1.msra.mxu0 0.0
        %592 = vmatprep.subr.mxu0 0.0
        %593 = vmatpush1.msra.mxu0 0.0
        %594 = vmatprep.subr.mxu0 0.0
        %595 = vmatpush1.msra.mxu0 0.0
        %596 = vmatprep.subr.mxu0 0.0
        %597 = vmatpush1.msra.mxu0 0.0
        %598 = vmatprep.subr.mxu0 0.0
        %599 = vmatpush1.msra.mxu0 0.0
        %600 = vmatprep.subr.mxu0 0.0
        %601 = vmatpush1.msra.mxu0 0.0
        %602 = vmatprep.subr.mxu0 0.0
        %603 = vmatpush1.msra.mxu0 0.0
        %604 = vmatprep.subr.mxu0 0.0
        %605 = vmatpush1.msra.mxu0 0.0
        %606 = vmatprep.subr.mxu0 0.0
        %607 = vmatpush1.msra.mxu0 0.0
        %608 = vmatprep.subr.mxu0 0.0
        %609 = vmatpush1.msra.mxu0 0.0
        %610 = vmatprep.subr.mxu0 0.0
        %611 = vmatpush1.msra.mxu0 0.0
        %612 = vmatprep.subr.mxu0 0.0
        %613 = vmatpush1.msra.mxu0 0.0
        %614 = vmatprep.subr.mxu0 0.0
        %615 = vmatpush1.msra.mxu0 0.0
        %616 = vmatprep.subr.mxu0 0.0
        %617 = vmatpush1.msra.mxu0 0.0
        %618 = vmatprep.subr.mxu0 0.0
        %619 = vmatpush1.msra.mxu0 0.0
        %620 = vmatprep.subr.mxu0 0.0
        %621 = vmatpush1.msra.mxu0 0.0
        %622 = vmatprep.mubr.f32.mxu0 0.0
        %623 = vmatmul.mubr.f32.gmra.mrb[0].mxu0 %v556
        %v624 = vpop.f32.mrb[0].mxu0
        %v625 = vadd.f32 0.0, %v624
        %v626 = vpop.f32.mrb[0].mxu0
        %627 = vdwg.mxu0
        %v628 = vsub.f32 %v540, %v264
        %v629 = vsub.f32 %v545, %v265
        %v630 = vmul.f32 %v628, %v628
        %v631 = vmul.f32 %v629, %v629
        %v632 = vsel %vm286, %v630, 0.0
        %v633 = vsel %vm286, %v631, 0.0
        %v634 = vadd.f32 %v632, %v633
        %635 = vadd.xlane.f32.xlu0 %v634
        %v636 = vpop.xlane.xlu0 %635
        %v637 = vrot.slane %v636, 4
        %v638 = vadd.f32 %v636, %v637
        %v639 = vrot.slane %v638, 2
        %v640 = vadd.f32 %v638, %v639
        %v641 = vrot.slane %v640, 1
        %v642 = vadd.f32 %v640, %v641
        %s643 = vtos %v642
        %vm644 = vcmp.eq.s32.totalorder %v427, 64
        %v645 = vstv %s643
        %v646 = vsel %vm644, %v645, %v625
        %s647 = scalar_lea.vmem %s254, %s26
        %648 = vst [vmem:[%s647] sm:$0x1] %v646
        %p649 = scmp.eq.s32.totalorder %s26, 2
        // Predicated region
        $region37: #{tpu_custom_call.1} parent=31 // pred_check
          %p650 = pneg %p649
        $region38: #{tpu_custom_call.1} parent=31 // pred_check_branch
          %652 = sbr.rel (%p650) target = $region40
        $region39: #{tpu_custom_call.1} parent=31 // pred_region
          %v653 = vld [vmem:[%s247] sm:$0xff]
          %v654 = vld [vmem:[%s247 + $0x8] sm:$0xff]
          %v655 = vld [vmem:[#allocation2] sm:$0xff]
          %v656 = vld [vmem:[#allocation2 + $0x8] sm:$0xff]
          %v657 = vsub.f32 %v653, %v655
          %v658 = vsub.f32 %v654, %v656
          %659 = vst.msk [vmem:[#allocation3] sm:$0xff] %vm286, %v657
          %660 = vst.msk [vmem:[#allocation3 + $0x8] sm:$0xff] %vm286, %v658
        $region40: #{tpu_custom_call.1} parent=31 // pred_fallthru
          _
        %s661 = sand.u32 %s137, 1
        %s662 = scalar_lea.sflag [#allocation6], %s661
        %s663 = sand.u32 %s137, 1
        %s664 = smul.addr %s663, 16
        %s665 = scalar_lea.vmem [#allocation5], %s664
        %p666 = scmp.lt.s32.totalorder %s25, 0
        %s667 = scalar_select %p666, %s25, 0
        %s668 = smul.addr %s667, 4
        %s669 = scalar_lea.vmem %s5, %s668
        // Predicated region
        $region41: #{tpu_custom_call.1} parent=31 // pred_check
          %p670 = pneg %p119
        $region42: #{tpu_custom_call.1} parent=31 // pred_check_branch
          %672 = sbr.rel (%p670) target = $region44
        $region43: #{tpu_custom_call.1} parent=31 // pred_region
          %s673 = smul.u32 2, %s25
          %s675 = ssub.s32 256, 256
          %676 = vsyncadd [#allocation4], %s675
          %s677 = smul.addr %s673, 128
          %s678 = scalar_lea.hbm %s3, %s677
          %s679 = sshll.u32 [#allocation3], 4
          %s680 = int_to_ptr.vmem [resolvable:$true] %s679
          %685 = dma.vmem_to_hbm [thread:$0]  %s680, 256, %s678, [#allocation4], 128, 128, 8
        $region44: #{tpu_custom_call.1} parent=31 // pred_fallthru
          _
        // Predicated region
        $region45: #{tpu_custom_call.1} parent=31 // pred_check
          %p686 = pneg %p147
        $region46: #{tpu_custom_call.1} parent=31 // pred_check_branch
          %688 = sbr.rel (%p686) target = $region48
        $region47: #{tpu_custom_call.1} parent=31 // pred_region
          %s689 = smul.u32 2, %s25
          %s691 = ssub.s32 256, 256
          %692 = vsyncadd %s662, %s691
          %s693 = smul.addr %s26, 2
          %s694 = sadd.s32 %s689, %s693
          %s695 = smul.addr %s694, 128
          %s696 = scalar_lea.hbm %s4, %s695
          %s697 = sshll.u32 %s665, 4
          %s698 = int_to_ptr.vmem [resolvable:$true] %s697
          %703 = dma.vmem_to_hbm [thread:$0]  %s698, 256, %s696, %s662, 128, 128, 8
        $region48: #{tpu_custom_call.1} parent=31 // pred_fallthru
          _
        // Predicated region
        $region49: #{tpu_custom_call.1} parent=31 // pred_check
          %p704 = pneg %p173
        $region50: #{tpu_custom_call.1} parent=31 // pred_check_branch
          %706 = sbr.rel (%p704) target = $region52
        $region51: #{tpu_custom_call.1} parent=31 // pred_region
          _
        $region52: #{tpu_custom_call.1} parent=31 // pred_fallthru
          _
        // Predicated region
        $region53: #{tpu_custom_call.1} parent=31 // pred_check
          %p707 = pneg %p119
        $region54: #{tpu_custom_call.1} parent=31 // pred_check_branch
          %709 = sbr.rel (%p707) target = $region56
        $region55: #{tpu_custom_call.1} parent=31 // pred_region
          %710 = dma.done [#allocation4], 256
        $region56: #{tpu_custom_call.1} parent=31 // pred_fallthru
          _
        // Predicated region
        $region57: #{tpu_custom_call.1} parent=31 // pred_check
          %p711 = pneg %p173
        $region58: #{tpu_custom_call.1} parent=31 // pred_check_branch
          %713 = sbr.rel (%p711) target = $region60
        $region59: #{tpu_custom_call.1} parent=31 // pred_region
          %p714 = scmp.lt.s32.totalorder %s25, 0
          %s715 = scalar_select %p714, %s25, 0
          %s716 = smul.addr %s715, 4
          %s717 = scalar_lea.vmem %s5, %s716
        $region60: #{tpu_custom_call.1} parent=31 // pred_fallthru
          _
      $region32: #{tpu_custom_call.1} parent=5 // pred_fallthru
        _
      %p718 = scmp.le.s32.totalorder 2, %s16
      // Predicated region
      $region61: #{tpu_custom_call.1} parent=5 // pred_check
        %p719 = pneg %p718
      $region62: #{tpu_custom_call.1} parent=5 // pred_check_branch
        %721 = sbr.rel (%p719) target = $region64
      $region63: #{tpu_custom_call.1} parent=5 // pred_region
        %s722 = ssub.s32 %s16, 2
        // Predicated region
        $region65: #{tpu_custom_call.1} parent=63 // pred_check
          %p723 = pneg %p153
        $region66: #{tpu_custom_call.1} parent=63 // pred_check_branch
          %725 = sbr.rel (%p723) target = $region68
        $region67: #{tpu_custom_call.1} parent=63 // pred_region
          %s726 = sand.u32 %s138, 1
          %s727 = scalar_lea.sflag [#allocation6], %s726
          %s728 = sand.u32 %s138, 1
          %s729 = smul.addr %s728, 16
          %s730 = scalar_lea.vmem [#allocation5], %s729
          %731 = dma.done %s727, 256
        $region68: #{tpu_custom_call.1} parent=63 // pred_fallthru
          _
      $region64: #{tpu_custom_call.1} parent=5 // pred_fallthru
        _
    $region6: #{tpu_custom_call.1} parent=1 // loop_footer
      %s20 = sadd.s32 1, %s16
    $region7: #{tpu_custom_call.1} parent=1 // loop_footer_branch
      %15 = sbr.rel target = $region3
    $region8: #{tpu_custom_call.1} parent=1 // loop_exit
      _
    %732 = vsyncpa [#allocation4], 1
    %s733 = scalar_lea.sflag [#allocation4], 1
    %734 = vsyncpa %s733, 1
    %735 = vsyncpa [#allocation6], 1
    %s736 = scalar_lea.sflag [#allocation6], 1
    %737 = vsyncpa %s736, 1

</llo_original>
